<compile_context>
chip_gen: v7x
topology: tpu7x:2x2x1
jax: 0.10.0
libtpu: 0.0.40
codegen_flags: <defaults>
</compile_context>

<pallas_src>
import jax
import jax.numpy as jnp
from jax.experimental import pallas as pl
from jax.experimental.pallas import tpu as pltpu  # noqa: F401  (kept for parity / future tiled path)

_LANES = 128


def _add_kernel(a_ref, b_ref, o_ref):
    # One whole-array VMEM block: a single VPU add with lane-dense,
    # unmasked full-width loads and stores.
    o_ref[...] = a_ref[...] + b_ref[...]


def _lane_dense_shape(shape):
    """Collapse an arbitrary shape into a (rows, 128) lane-dense 2-D view, if possible."""
    total = 1
    for d in shape:
        total *= d
    if total % _LANES == 0:
        return (total // _LANES, _LANES)
    return None


def _pallas_add(a, b):
    assert a.shape == b.shape and a.dtype == b.dtype
    return pl.pallas_call(
        _add_kernel,
        out_shape=jax.ShapeDtypeStruct(a.shape, a.dtype),
        # Write the result in place over the first operand's buffer (x442).
        input_output_aliases={0: 0},
    )(a, b)


def residual_add_fn(x442, x427):
    """x443 = x442 + x427 (elementwise), matching M.forward semantics.

    The kernel is fed a lane-dense (rows, 128) view so each vreg is ~94%
    useful data instead of ~5% with the raw NCHW (1, 256, 7, 7) layout.
    """
    # TODO(synk): in the full EfficientNetV2 graph this add belongs in the
    # epilogue of the kernel that produces x442 (with activations kept
    # channels-last / flattened end-to-end so no relayout appears here);
    # standalone, the in-jit reshape below is the closest lane-dense form.
    orig_shape = x442.shape
    dense = _lane_dense_shape(orig_shape)
    if dense is None:
        # Element count not a multiple of 128: fall back to the raw shape.
        return _pallas_add(x442, x427)
    a2d = jnp.reshape(x442, dense)
    b2d = jnp.reshape(x427, dense)
    out2d = _pallas_add(a2d, b2d)
    return jnp.reshape(out2d, orig_shape)


# Donate x442's buffer so the in-place alias is realized end-to-end.
residual_add = jax.jit(residual_add_fn, donate_argnums=(0,))


if __name__ == "__main__":
    key = jax.random.PRNGKey(0)
    k1, k2 = jax.random.split(key)
    # Shapes match the module's forward: (1, 256, 7, 7) NCHW, f32.
    x442 = jax.random.normal(k1, (1, 256, 7, 7), dtype=jnp.float32)
    x427 = jax.random.normal(k2, (1, 256, 7, 7), dtype=jnp.float32)

    # Compute the reference BEFORE calling the donating kernel (x442 is donated).
    ref = x442 + x427
    jax.block_until_ready(ref)

    out = residual_add(x442, x427)
    jax.block_until_ready(out)

    assert out.shape == (1, 256, 7, 7)
    assert out.dtype == jnp.float32
    assert jnp.allclose(out, ref, atol=1e-6, rtol=1e-6)
    print("KERNEL_OK")
</pallas_src>

<mosaic_0001>
module attributes {stable_mosaic.version = 11 : i64} {
  func.func @_add_kernel(%arg0: memref<98x128xf32, #tpu.memory_space<vmem>>, %arg1: memref<98x128xf32, #tpu.memory_space<vmem>>, %arg2: memref<98x128xf32, #tpu.memory_space<vmem>>) attributes {dimension_semantics = [], scalar_prefetch = 0 : i64, scratch_operands = 0 : i64, tpu.core_type = #tpu.core_type<tc>} {
    %c0 = arith.constant 0 : index
    %c0_0 = arith.constant 0 : index
    %0 = vector.load %arg0[%c0, %c0_0] : memref<98x128xf32, #tpu.memory_space<vmem>>, vector<98x128xf32>
    %c0_1 = arith.constant 0 : index
    %c0_2 = arith.constant 0 : index
    %1 = vector.load %arg1[%c0_1, %c0_2] : memref<98x128xf32, #tpu.memory_space<vmem>>, vector<98x128xf32>
    %2 = arith.addf %0, %1 : vector<98x128xf32>
    %c0_3 = arith.constant 0 : index
    %c0_4 = arith.constant 0 : index
    %3 = vector.load %arg2[%c0_3, %c0_4] : memref<98x128xf32, #tpu.memory_space<vmem>>, vector<98x128xf32>
    tpu.vector_store %arg2[%c0_3, %c0_4], %2 {strides = array<i32>} : memref<98x128xf32, #tpu.memory_space<vmem>>, vector<98x128xf32>,
    return
  }
}

</mosaic_0001>

<llo_original>
// kernel: residual_add_fn.1
$region0: #{residual_add_fn.1}
  #allocation0 [shape = 'u32[]', space=smem, size = 0x4, offset = 0x4, fixed_abs, tag = 'smem constant byte address 0x4 - core index']
  #allocation1 [shape = 'u32[144,128]{1,0:T(1,128)}', space=vmem, size = 0x12000, scoped, tag = 'internal scratch']
  %s0 = inlined_call_operand.vmem [shape: f32[98,128], index: 0, kind: input, shape index: {}, may-alias: {0,2}]
  %s1 = inlined_call_operand.vmem [shape: f32[98,128], index: 1, kind: input, shape index: {}]
  %s2 = inlined_call_operand.vmem [shape: f32[98,128], index: 2, kind: output, shape index: {}, may-alias: {0,2}]
  %s3 = sld [smem:[#allocation0]]
  $region18: #{residual_add_fn.1} parent=0
    _
  %s5 = ssub.s32 1, %s3
  %s6 = scalar_select 0, %s5, %s3
  // Predicated region
  $region2: #{residual_add_fn.1} parent=0 // pred_check
    _
  $region3: #{residual_add_fn.1} parent=0 // pred_check_branch
    %8 = sbr.rel (0) target = $region5
  $region4: #{residual_add_fn.1} parent=0 // pred_region
    _
  $region5: #{residual_add_fn.1} parent=0 // pred_fallthru
    _
  // Predicated region
  $region6: #{residual_add_fn.1} parent=0 // pred_check
    _
  $region7: #{residual_add_fn.1} parent=0 // pred_check_branch
    %10 = sbr.rel (0) target = $region9
  $region8: #{residual_add_fn.1} parent=0 // pred_region
    _
  $region9: #{residual_add_fn.1} parent=0 // pred_fallthru
    _
  %v11 = vld [vmem:[%s0] sm:$0xff]
  %v12 = vld [vmem:[%s0 + $0x8] sm:$0xff]
  %v13 = vld [vmem:[%s0 + $0x10] sm:$0xff]
  %v14 = vld [vmem:[%s0 + $0x18] sm:$0xff]
  %v15 = vld [vmem:[%s0 + $0x20] sm:$0xff]
  %v16 = vld [vmem:[%s0 + $0x28] sm:$0xff]
  %v17 = vld [vmem:[%s0 + $0x30] sm:$0xff]
  %v18 = vld [vmem:[%s0 + $0x38] sm:$0xff]
  %v19 = vld [vmem:[%s0 + $0x40] sm:$0xff]
  %v20 = vld [vmem:[%s0 + $0x48] sm:$0xff]
  %v21 = vld [vmem:[%s0 + $0x50] sm:$0xff]
  %v22 = vld [vmem:[%s0 + $0x58] sm:$0xff]
  %v23 = vld [vmem:[%s0 + $0x60] sm:$0x3]
  %v24 = vld [vmem:[%s1] sm:$0xff]
  %v25 = vld [vmem:[%s1 + $0x8] sm:$0xff]
  %v26 = vld [vmem:[%s1 + $0x10] sm:$0xff]
  %v27 = vld [vmem:[%s1 + $0x18] sm:$0xff]
  %v28 = vld [vmem:[%s1 + $0x20] sm:$0xff]
  %v29 = vld [vmem:[%s1 + $0x28] sm:$0xff]
  %v30 = vld [vmem:[%s1 + $0x30] sm:$0xff]
  %v31 = vld [vmem:[%s1 + $0x38] sm:$0xff]
  %v32 = vld [vmem:[%s1 + $0x40] sm:$0xff]
  %v33 = vld [vmem:[%s1 + $0x48] sm:$0xff]
  %v34 = vld [vmem:[%s1 + $0x50] sm:$0xff]
  %v35 = vld [vmem:[%s1 + $0x58] sm:$0xff]
  %v36 = vld [vmem:[%s1 + $0x60] sm:$0x3]
  %v37 = vadd.f32 %v11, %v24
  %v38 = vadd.f32 %v12, %v25
  %v39 = vadd.f32 %v13, %v26
  %v40 = vadd.f32 %v14, %v27
  %v41 = vadd.f32 %v15, %v28
  %v42 = vadd.f32 %v16, %v29
  %v43 = vadd.f32 %v17, %v30
  %v44 = vadd.f32 %v18, %v31
  %v45 = vadd.f32 %v19, %v32
  %v46 = vadd.f32 %v20, %v33
  %v47 = vadd.f32 %v21, %v34
  %v48 = vadd.f32 %v22, %v35
  %v49 = vadd.f32 %v23, %v36
  %50 = vst [vmem:[%s2] sm:$0xff] %v37
  %51 = vst [vmem:[%s2 + $0x8] sm:$0xff] %v38
  %52 = vst [vmem:[%s2 + $0x10] sm:$0xff] %v39
  %53 = vst [vmem:[%s2 + $0x18] sm:$0xff] %v40
  %54 = vst [vmem:[%s2 + $0x20] sm:$0xff] %v41
  %55 = vst [vmem:[%s2 + $0x28] sm:$0xff] %v42
  %56 = vst [vmem:[%s2 + $0x30] sm:$0xff] %v43
  %57 = vst [vmem:[%s2 + $0x38] sm:$0xff] %v44
  %58 = vst [vmem:[%s2 + $0x40] sm:$0xff] %v45
  %59 = vst [vmem:[%s2 + $0x48] sm:$0xff] %v46
  %60 = vst [vmem:[%s2 + $0x50] sm:$0xff] %v47
  %61 = vst [vmem:[%s2 + $0x58] sm:$0xff] %v48
  %62 = vst [vmem:[%s2 + $0x60] sm:$0x3] %v49
  // Predicated region
  $region10: #{residual_add_fn.1} parent=0 // pred_check
    _
  $region11: #{residual_add_fn.1} parent=0 // pred_check_branch
    %64 = sbr.rel (0) target = $region13
  $region12: #{residual_add_fn.1} parent=0 // pred_region
    _
  $region13: #{residual_add_fn.1} parent=0 // pred_fallthru
    _
  // Predicated region
  $region14: #{residual_add_fn.1} parent=0 // pred_check
    _
  $region15: #{residual_add_fn.1} parent=0 // pred_check_branch
    %66 = sbr.rel (0) target = $region17
  $region16: #{residual_add_fn.1} parent=0 // pred_region
    _
  $region17: #{residual_add_fn.1} parent=0 // pred_fallthru
    _

</llo_original>
